<compile_context>
chip_gen: v7x
topology: tpu7x:2x2x1
jax: 0.10.0
libtpu: 0.0.40
codegen_flags: <defaults>
</compile_context>

<pallas_src>
import math
from functools import partial

import jax
import jax.numpy as jnp
from jax import lax
from jax.experimental import pallas as pl
from jax.experimental.pallas import tpu as pltpu


# ----------------------------------------------------------------------------
# Plain-JAX parameter setup (matrices), mirroring the PyTorch helpers.
# ----------------------------------------------------------------------------
def _normalize(x, axis):
    n = jnp.linalg.norm(x, axis=axis, keepdims=True)
    return x / jnp.maximum(n, jnp.asarray(1e-6, x.dtype))


def look_at(eyes, centers, ups):
    B = eyes.shape[0]
    zaxis = _normalize(eyes - centers, 1)
    xaxis = _normalize(jnp.cross(ups, zaxis, axis=1), 1)
    yaxis = jnp.cross(zaxis, xaxis, axis=1)
    z = jnp.zeros((B,), eyes.dtype)
    o = jnp.ones((B,), eyes.dtype)
    translation = jnp.stack(
        [o, z, z, -eyes[:, 0],
         z, o, z, -eyes[:, 1],
         z, z, o, -eyes[:, 2],
         z, z, z, o], axis=-1).reshape(-1, 4, 4)
    orientation = jnp.stack(
        [xaxis[:, 0], xaxis[:, 1], xaxis[:, 2], z,
         yaxis[:, 0], yaxis[:, 1], yaxis[:, 2], z,
         zaxis[:, 0], zaxis[:, 1], zaxis[:, 2], z,
         z, z, z, o], axis=-1).reshape(-1, 4, 4)
    return orientation @ translation


def orthorgonal(scalex, scaley, z_near, z_far):
    z = jnp.zeros_like(z_near)
    o = jnp.ones_like(z_near)
    k1 = -2.0 / (z_far - z_near)
    k2 = (z_far + z_near) / (z_far - z_near)
    return jnp.stack(
        [scalex, z, z, z,
         z, scaley, z, z,
         z, z, k1, k2,
         z, z, z, o], axis=-1).reshape(-1, 4, 4)


def perspective(fovy, aspect, z_near, z_far):
    t = jnp.tan(fovy / 2.0)
    z = jnp.zeros_like(fovy)
    o = jnp.ones_like(fovy)
    k1 = -(z_far + z_near) / (z_far - z_near)
    k2 = -2.0 * z_far * z_near / (z_far - z_near)
    return jnp.stack(
        [1.0 / aspect / t, z, z, z,
         z, 1.0 / t, z, z,
         z, z, k1, k2,
         z, z, -o, z], axis=-1).reshape(-1, 4, 4)


# ----------------------------------------------------------------------------
# Kernel 1: lane-major homogeneous transform + NDC->pixel mapping (VPU only).
# ----------------------------------------------------------------------------
def _transform_kernel(mat_ref, pts_ref, out_ref, *, image_size):
    # mat_ref: SMEM (1, 16) f32 (row-major 4x4); pts_ref/out_ref: (3, TP).
    x = pts_ref[0:1, :]
    y = pts_ref[1:2, :]
    z = pts_ref[2:3, :]

    def hrow(r):
        return (mat_ref[0, 4 * r + 0] * x + mat_ref[0, 4 * r + 1] * y
                + mat_ref[0, 4 * r + 2] * z + mat_ref[0, 4 * r + 3])

    hx, hy, hz, hw = hrow(0), hrow(1), hrow(2), hrow(3)
    inv_w = 1.0 / hw                      # w == 1 for orthographic projection
    xs = hx * inv_w
    ys = hy * inv_w
    zs = hz * inv_w

    half = 0.5 * (image_size - 1)
    out_ref[0:1, :] = (1.0 - ys) * half   # i_pix = (-y + 1)/2 * (S-1)
    out_ref[1:2, :] = (xs + 1.0) * half   # j_pix = ( x + 1)/2 * (S-1)
    out_ref[2:3, :] = zs


def transform_points(mat16, pts3, image_size, tile_p):
    P_pad = pts3.shape[1]
    kernel = partial(_transform_kernel, image_size=image_size)
    return pl.pallas_call(
        kernel,
        out_shape=jax.ShapeDtypeStruct((3, P_pad), jnp.float32),
        grid_spec=pltpu.PrefetchScalarGridSpec(
            num_scalar_prefetch=0,
            grid=(P_pad // tile_p,),
            in_specs=[
                pl.BlockSpec(memory_space=pltpu.MemorySpace.SMEM),   # matrix
                pl.BlockSpec((3, tile_p), lambda t: (0, t)),
            ],
            out_specs=pl.BlockSpec((3, tile_p), lambda t: (0, t)),
        ),
        compiler_params=pltpu.CompilerParams(dimension_semantics=("parallel",)),
    )(mat16, pts3)


# ----------------------------------------------------------------------------
# Kernel 2: fused multi-radius p2i rasterization (cos kernel, reduce='max').
# ----------------------------------------------------------------------------
def _p2i_max_kernel(flags_ref, pts_ref, out_ref, *, radii, h_tile, nh, nc):
    b = pl.program_id(0)
    h = pl.program_id(1)
    c = pl.program_id(2)

    @pl.when(c == 0)
    def _init():
        out_ref[...] = jnp.zeros_like(out_ref)        # zero background

    flag = flags_ref[b * (nh * nc) + h * nc + c]

    @pl.when(flag > 0)
    def _compute():
        TN = pts_ref.shape[1]
        W = out_ref.shape[3]

        pts = pts_ref[0]                              # (TN, 4)
        pi = pts[:, 0:1]                              # (TN, 1) pixel row
        pj = pts[:, 1:2]                              # (TN, 1) pixel col
        ft = pts[:, 2:3]                              # (TN, 1) depth feature

        row0 = (h * h_tile).astype(jnp.float32)
        rows = lax.broadcasted_iota(jnp.float32, (TN, h_tile), 1) + row0
        cols = lax.broadcasted_iota(jnp.float32, (TN, W), 1)

        di = rows - pi                                # (TN, HT)
        dj = cols - pj                                # (TN, W)
        di2 = di * di
        dj2 = dj * dj
        dist2 = di2[:, :, None] + dj2[:, None, :]     # (TN, HT, W)
        f3 = ft[:, :, None]                           # (TN, 1, 1)

        for k, r in enumerate(radii):
            r = float(r)
            # cos(pi/2 * d / r) as a polynomial in t = (pi*d/(2r))^2 (pure VALU)
            t = dist2 * ((math.pi * math.pi / 4.0) / (r * r))
            poly = 1.0 + t * (-0.5 + t * (1.0 / 24.0
                            + t * (-1.0 / 720.0 + t * (1.0 / 40320.0))))
            w = jnp.where(dist2 <= r * r, poly, 0.0)
            vals = w * f3                             # (TN, HT, W)
            img = jnp.max(vals, axis=0)               # (HT, W) VALU max-accumulate
            out_ref[0, k] = jnp.maximum(out_ref[0, k], img)


def _pick_h_tile(H, W, tile_n, budget_bytes=2 * 1024 * 1024):
    for ht in (64, 32, 16, 8):
        if ht <= H and H % ht == 0 and tile_n * ht * W * 4 <= budget_bytes:
            return ht
    return H


def rasterize(flags, pts4, image_size, h_tile, tile_n, radii):
    B, N_pad, _ = pts4.shape
    H = W = image_size
    NH = H // h_tile
    NC = N_pad // tile_n
    K = len(radii)
    kernel = partial(_p2i_max_kernel, radii=tuple(float(r) for r in radii),
                     h_tile=h_tile, nh=NH, nc=NC)
    return pl.pallas_call(
        kernel,
        out_shape=jax.ShapeDtypeStruct((B, K, H, W), jnp.float32),
        grid_spec=pltpu.PrefetchScalarGridSpec(
            num_scalar_prefetch=0,
            grid=(B, NH, NC),
            in_specs=[
                pl.BlockSpec(memory_space=pltpu.MemorySpace.SMEM),     # flags
                pl.BlockSpec((1, tile_n, 4), lambda b, h, c: (b, c, 0)),
            ],
            out_specs=pl.BlockSpec((1, K, h_tile, W),
                                   lambda b, h, c: (b, 0, h, 0)),
        ),
        compiler_params=pltpu.CompilerParams(
            dimension_semantics=("parallel", "parallel", "arbitrary")),
    )(flags, pts4)


# ----------------------------------------------------------------------------
# Module wrapper (mirrors ComputeDepthMaps.forward).
# ----------------------------------------------------------------------------
class ComputeDepthMapsPallas:
    def __init__(self, projection="orthorgonal", eyepos_scale=1.0, image_size=256):
        assert projection in {"perspective", "orthorgonal"}
        self.image_size = image_size
        self.eyes_pos_list = [[-1, -1, -1], [-1, -1, 1], [-1, 1, -1], [-1, 1, 1],
                              [1, -1, -1], [1, -1, 1], [1, 1, -1], [1, 1, 1]]
        self.num_views = len(self.eyes_pos_list)

        if projection == "perspective":
            proj = perspective(jnp.array([math.pi / 4], jnp.float32),
                               jnp.array([1.0], jnp.float32),
                               jnp.array([0.1], jnp.float32),
                               jnp.array([10.0], jnp.float32))
        else:
            proj = orthorgonal(jnp.array([1.5], jnp.float32),
                               jnp.array([1.5], jnp.float32),
                               jnp.array([0.1], jnp.float32),
                               jnp.array([10.0], jnp.float32))

        mats = []
        for i in range(self.num_views):
            vm = look_at(jnp.array([self.eyes_pos_list[i]], jnp.float32) * eyepos_scale,
                         jnp.array([[0.0, 0.0, 0.0]], jnp.float32),
                         jnp.array([[0.0, 0.0, 1.0]], jnp.float32))
            mats.append((proj @ vm)[0])  # (4, 4)
        self.pre_matrices = mats

    def __call__(self, data, view_id=0, radius_list=(15,)):
        if view_id >= self.num_views:
            return None
        B, N, _ = data.shape
        H = W = self.image_size
        mat = self.pre_matrices[view_id]                      # (4, 4)
        radii = [float(r) for r in radius_list]

        # ---- transform (lane-major Pallas kernel) ----
        P = B * N
        TP = 512
        P_pad = ((P + TP - 1) // TP) * TP
        pts3 = data.reshape(P, 3).astype(jnp.float32).T       # (3, P) tiny transpose
        pts3 = jnp.pad(pts3, ((0, 0), (0, P_pad - P)))
        mat16 = mat.reshape(1, 16).astype(jnp.float32)
        ijz = transform_points(mat16, pts3, self.image_size, TP)[:, :P]

        # ---- global depth normalization (tiny, wrapper-side) ----
        z = ijz[2]
        zmin = z.min()
        zmax = z.max()
        feat = 1.0 - (z - zmin) / jnp.maximum(zmax - zmin, 1e-12)

        i_pix = ijz[0].reshape(B, N)
        j_pix = ijz[1].reshape(B, N)
        feat = feat.reshape(B, N)

        # ---- pad N to a point-chunk multiple; build [B, N_pad, 4] table ----
        tile_n = 128
        N_pad = ((N + tile_n - 1) // tile_n) * tile_n
        padn = N_pad - N
        FAR = -1.0e6     # padded points never land within any radius
        i_p = jnp.pad(i_pix, ((0, 0), (0, padn)), constant_values=FAR)
        j_p = jnp.pad(j_pix, ((0, 0), (0, padn)), constant_values=FAR)
        f_p = jnp.pad(feat, ((0, 0), (0, padn)), constant_values=0.0)
        pts4 = jnp.stack([i_p, j_p, f_p, jnp.zeros_like(f_p)], axis=-1)

        # ---- per-(image-tile, point-chunk) activity flags (tile skipping) ----
        HT = _pick_h_tile(H, W, tile_n)
        NH = H // HT
        NC = N_pad // tile_n
        r_max = max(radii)
        ip_c = i_p.reshape(B, NC, tile_n)
        h_idx = jnp.arange(NH, dtype=jnp.float32)
        lo = h_idx * HT - (r_max + 1.0)
        hi = (h_idx + 1.0) * HT - 1.0 + (r_max + 1.0)
        act = ((ip_c[:, None, :, :] >= lo[None, :, None, None]) &
               (ip_c[:, None, :, :] <= hi[None, :, None, None]))
        flags = jnp.any(act, axis=-1).astype(jnp.int32).reshape(-1)  # (B*NH*NC,)

        return rasterize(flags, pts4, self.image_size, HT, tile_n, radii)


# ----------------------------------------------------------------------------
# Plain-JAX reference (exact sqrt/cos) for validation.
# ----------------------------------------------------------------------------
def _reference_depth_maps(data, mat, image_size, radius_list):
    B, N, _ = data.shape
    pts = data.reshape(-1, 3).astype(jnp.float32)
    hom = jnp.concatenate([pts, jnp.ones((B * N, 1), jnp.float32)], axis=1) @ mat.T
    xyz = hom[:, :3] / hom[:, 3:4]
    i = (-xyz[:, 1] + 1.0) * 0.5 * (image_size - 1)
    j = (xyz[:, 0] + 1.0) * 0.5 * (image_size - 1)
    z = xyz[:, 2]
    feat = 1.0 - (z - z.min()) / jnp.maximum(z.max() - z.min(), 1e-12)
    i = i.reshape(B, N)
    j = j.reshape(B, N)
    feat = feat.reshape(B, N)
    rows = jnp.arange(image_size, dtype=jnp.float32)
    cols = jnp.arange(image_size, dtype=jnp.float32)
    di = rows[None, :, None] - i[:, None, :]                    # (B, H, N)
    dj = cols[None, :, None] - j[:, None, :]                    # (B, W, N)
    dist = jnp.sqrt(di[:, :, None, :] ** 2 + dj[:, None, :, :] ** 2)
    maps = []
    for r in radius_list:
        r = float(r)
        w = jnp.where(dist <= r, jnp.cos(dist * (math.pi / 2.0) / r), 0.0)
        maps.append(jnp.max(w * feat[:, None, None, :], axis=-1))
    return jnp.stack(maps, axis=1)


if __name__ == "__main__":
    key = jax.random.PRNGKey(0)
    B, N, image_size = 2, 128, 32
    data = jax.random.uniform(key, (B, N, 3), jnp.float32, minval=-0.5, maxval=0.5)

    model = ComputeDepthMapsPallas(projection="orthorgonal",
                                   eyepos_scale=1.0,
                                   image_size=image_size)
    radius_list = (3, 5)
    out = model(data, view_id=0, radius_list=radius_list)
    out = jax.block_until_ready(out)

    assert out.shape == (B, len(radius_list), image_size, image_size), out.shape
    assert bool(jnp.isfinite(out).all())
    assert bool((out >= -1e-6).all()) and bool((out <= 1.0 + 1e-5).all())

    ref = _reference_depth_maps(data, model.pre_matrices[0], image_size, radius_list)
    err = float(jnp.max(jnp.abs(out - ref)))
    assert err < 1e-3, f"max abs error vs exact-cos reference: {err}"

    print("KERNEL_OK")
</pallas_src>

<mosaic_0001>
module attributes {stable_mosaic.version = 11 : i64} {
  func.func @_transform_kernel(%arg0: i32, %arg1: memref<1x16xf32, #tpu.memory_space<smem>>, %arg2: memref<3x512xf32, #tpu.memory_space<vmem>>, %arg3: memref<3x512xf32, #tpu.memory_space<vmem>>) attributes {dimension_semantics = [#tpu.dimension_semantics<parallel>], iteration_bounds = array<i64: 1>, scalar_prefetch = 0 : i64, scratch_operands = 0 : i64, tpu.core_type = #tpu.core_type<tc>, window_params = [{transform_indices = @transform_0, window_bounds = array<i64: 1, 16>}, {transform_indices = @transform_1, window_bounds = array<i64: 3, 512>}, {transform_indices = @transform_2, window_bounds = array<i64: 3, 512>}]} {
    %c0 = arith.constant 0 : index
    %c0_0 = arith.constant 0 : index
    %0 = vector.load %arg2[%c0, %c0_0] : memref<3x512xf32, #tpu.memory_space<vmem>>, vector<1x512xf32>
    %c1 = arith.constant 1 : index
    %c0_1 = arith.constant 0 : index
    %1 = vector.load %arg2[%c1, %c0_1] : memref<3x512xf32, #tpu.memory_space<vmem>>, vector<1x512xf32>
    %c2 = arith.constant 2 : index
    %c0_2 = arith.constant 0 : index
    %2 = vector.load %arg2[%c2, %c0_2] : memref<3x512xf32, #tpu.memory_space<vmem>>, vector<1x512xf32>
    %c0_3 = arith.constant 0 : index
    %c0_4 = arith.constant 0 : index
    %3 = memref.load %arg1[%c0_3, %c0_4] : memref<1x16xf32, #tpu.memory_space<smem>>
    %4 = vector.broadcast %3 : f32 to vector<1x512xf32>
    %5 = arith.mulf %4, %0 : vector<1x512xf32>
    %c0_5 = arith.constant 0 : index
    %c1_6 = arith.constant 1 : index
    %6 = memref.load %arg1[%c0_5, %c1_6] : memref<1x16xf32, #tpu.memory_space<smem>>
    %7 = vector.broadcast %6 : f32 to vector<1x512xf32>
    %8 = arith.mulf %7, %1 : vector<1x512xf32>
    %9 = arith.addf %5, %8 : vector<1x512xf32>
    %c0_7 = arith.constant 0 : index
    %c2_8 = arith.constant 2 : index
    %10 = memref.load %arg1[%c0_7, %c2_8] : memref<1x16xf32, #tpu.memory_space<smem>>
    %11 = vector.broadcast %10 : f32 to vector<1x512xf32>
    %12 = arith.mulf %11, %2 : vector<1x512xf32>
    %13 = arith.addf %9, %12 : vector<1x512xf32>
    %c0_9 = arith.constant 0 : index
    %c3 = arith.constant 3 : index
    %14 = memref.load %arg1[%c0_9, %c3] : memref<1x16xf32, #tpu.memory_space<smem>>
    %15 = vector.broadcast %14 : f32 to vector<1x512xf32>
    %16 = arith.addf %13, %15 : vector<1x512xf32>
    %c0_10 = arith.constant 0 : index
    %c4 = arith.constant 4 : index
    %17 = memref.load %arg1[%c0_10, %c4] : memref<1x16xf32, #tpu.memory_space<smem>>
    %18 = vector.broadcast %17 : f32 to vector<1x512xf32>
    %19 = arith.mulf %18, %0 : vector<1x512xf32>
    %c0_11 = arith.constant 0 : index
    %c5 = arith.constant 5 : index
    %20 = memref.load %arg1[%c0_11, %c5] : memref<1x16xf32, #tpu.memory_space<smem>>
    %21 = vector.broadcast %20 : f32 to vector<1x512xf32>
    %22 = arith.mulf %21, %1 : vector<1x512xf32>
    %23 = arith.addf %19, %22 : vector<1x512xf32>
    %c0_12 = arith.constant 0 : index
    %c6 = arith.constant 6 : index
    %24 = memref.load %arg1[%c0_12, %c6] : memref<1x16xf32, #tpu.memory_space<smem>>
    %25 = vector.broadcast %24 : f32 to vector<1x512xf32>
    %26 = arith.mulf %25, %2 : vector<1x512xf32>
    %27 = arith.addf %23, %26 : vector<1x512xf32>
    %c0_13 = arith.constant 0 : index
    %c7 = arith.constant 7 : index
    %28 = memref.load %arg1[%c0_13, %c7] : memref<1x16xf32, #tpu.memory_space<smem>>
    %29 = vector.broadcast %28 : f32 to vector<1x512xf32>
    %30 = arith.addf %27, %29 : vector<1x512xf32>
    %c0_14 = arith.constant 0 : index
    %c8 = arith.constant 8 : index
    %31 = memref.load %arg1[%c0_14, %c8] : memref<1x16xf32, #tpu.memory_space<smem>>
    %32 = vector.broadcast %31 : f32 to vector<1x512xf32>
    %33 = arith.mulf %32, %0 : vector<1x512xf32>
    %c0_15 = arith.constant 0 : index
    %c9 = arith.constant 9 : index
    %34 = memref.load %arg1[%c0_15, %c9] : memref<1x16xf32, #tpu.memory_space<smem>>
    %35 = vector.broadcast %34 : f32 to vector<1x512xf32>
    %36 = arith.mulf %35, %1 : vector<1x512xf32>
    %37 = arith.addf %33, %36 : vector<1x512xf32>
    %c0_16 = arith.constant 0 : index
    %c10 = arith.constant 10 : index
    %38 = memref.load %arg1[%c0_16, %c10] : memref<1x16xf32, #tpu.memory_space<smem>>
    %39 = vector.broadcast %38 : f32 to vector<1x512xf32>
    %40 = arith.mulf %39, %2 : vector<1x512xf32>
    %41 = arith.addf %37, %40 : vector<1x512xf32>
    %c0_17 = arith.constant 0 : index
    %c11 = arith.constant 11 : index
    %42 = memref.load %arg1[%c0_17, %c11] : memref<1x16xf32, #tpu.memory_space<smem>>
    %43 = vector.broadcast %42 : f32 to vector<1x512xf32>
    %44 = arith.addf %41, %43 : vector<1x512xf32>
    %c0_18 = arith.constant 0 : index
    %c12 = arith.constant 12 : index
    %45 = memref.load %arg1[%c0_18, %c12] : memref<1x16xf32, #tpu.memory_space<smem>>
    %46 = vector.broadcast %45 : f32 to vector<1x512xf32>
    %47 = arith.mulf %46, %0 : vector<1x512xf32>
    %c0_19 = arith.constant 0 : index
    %c13 = arith.constant 13 : index
    %48 = memref.load %arg1[%c0_19, %c13] : memref<1x16xf32, #tpu.memory_space<smem>>
    %49 = vector.broadcast %48 : f32 to vector<1x512xf32>
    %50 = arith.mulf %49, %1 : vector<1x512xf32>
    %51 = arith.addf %47, %50 : vector<1x512xf32>
    %c0_20 = arith.constant 0 : index
    %c14 = arith.constant 14 : index
    %52 = memref.load %arg1[%c0_20, %c14] : memref<1x16xf32, #tpu.memory_space<smem>>
    %53 = vector.broadcast %52 : f32 to vector<1x512xf32>
    %54 = arith.mulf %53, %2 : vector<1x512xf32>
    %55 = arith.addf %51, %54 : vector<1x512xf32>
    %c0_21 = arith.constant 0 : index
    %c15 = arith.constant 15 : index
    %56 = memref.load %arg1[%c0_21, %c15] : memref<1x16xf32, #tpu.memory_space<smem>>
    %57 = vector.broadcast %56 : f32 to vector<1x512xf32>
    %58 = arith.addf %55, %57 : vector<1x512xf32>
    %cst = arith.constant 1.000000e+00 : f32
    %59 = vector.broadcast %cst : f32 to vector<1x512xf32>
    %60 = arith.divf %59, %58 : vector<1x512xf32>
    %61 = arith.mulf %16, %60 : vector<1x512xf32>
    %62 = arith.mulf %30, %60 : vector<1x512xf32>
    %63 = arith.mulf %44, %60 : vector<1x512xf32>
    %cst_22 = arith.constant 1.000000e+00 : f32
    %64 = vector.broadcast %cst_22 : f32 to vector<1x512xf32>
    %65 = arith.subf %64, %62 : vector<1x512xf32>
    %cst_23 = arith.constant 1.550000e+01 : f32
    %66 = vector.broadcast %cst_23 : f32 to vector<1x512xf32>
    %67 = arith.mulf %65, %66 : vector<1x512xf32>
    %c0_24 = arith.constant 0 : index
    %c0_25 = arith.constant 0 : index
    %68 = vector.load %arg3[%c0_24, %c0_25] : memref<3x512xf32, #tpu.memory_space<vmem>>, vector<1x512xf32>
    tpu.vector_store %arg3[%c0_24, %c0_25], %67 {strides = array<i32>} : memref<3x512xf32, #tpu.memory_space<vmem>>, vector<1x512xf32>,
    %cst_26 = arith.constant 1.000000e+00 : f32
    %69 = vector.broadcast %cst_26 : f32 to vector<1x512xf32>
    %70 = arith.addf %61, %69 : vector<1x512xf32>
    %cst_27 = arith.constant 1.550000e+01 : f32
    %71 = vector.broadcast %cst_27 : f32 to vector<1x512xf32>
    %72 = arith.mulf %70, %71 : vector<1x512xf32>
    %c1_28 = arith.constant 1 : index
    %c0_29 = arith.constant 0 : index
    %73 = vector.load %arg3[%c1_28, %c0_29] : memref<3x512xf32, #tpu.memory_space<vmem>>, vector<1x512xf32>
    tpu.vector_store %arg3[%c1_28, %c0_29], %72 {strides = array<i32>} : memref<3x512xf32, #tpu.memory_space<vmem>>, vector<1x512xf32>,
    %c2_30 = arith.constant 2 : index
    %c0_31 = arith.constant 0 : index
    %74 = vector.load %arg3[%c2_30, %c0_31] : memref<3x512xf32, #tpu.memory_space<vmem>>, vector<1x512xf32>
    tpu.vector_store %arg3[%c2_30, %c0_31], %63 {strides = array<i32>} : memref<3x512xf32, #tpu.memory_space<vmem>>, vector<1x512xf32>,
    return
  }
  func.func @transform_0(%arg0: i32) -> (i32, i32) {
    %c0_i32 = arith.constant 0 : i32
    %c0_i32_0 = arith.constant 0 : i32
    %c0_i32_1 = arith.constant 0 : i32
    return %c0_i32, %c0_i32_0 : i32, i32
  }
  func.func @transform_1(%arg0: i32) -> (i32, i32) {
    %c0_i32 = arith.constant 0 : i32
    %c0_i32_0 = arith.constant 0 : i32
    return %c0_i32, %arg0 : i32, i32
  }
  func.func @transform_2(%arg0: i32) -> (i32, i32) {
    %c0_i32 = arith.constant 0 : i32
    %c0_i32_0 = arith.constant 0 : i32
    return %c0_i32, %arg0 : i32, i32
  }
}

</mosaic_0001>

<llo_original>
// kernel: tpu_custom_call.1
$region0: #{tpu_custom_call.1}
  #allocation0 [shape = 'u32[]', space=smem, size = 0x4, offset = 0x4, fixed_abs, tag = 'smem constant byte address 0x4 - core index']
  #allocation1 [shape = 'u32[144,128]{1,0:T(1,128)}', space=vmem, size = 0x12000, scoped, tag = 'internal scratch']
  %s0 = inlined_call_operand.hbm [shape: f32[1,16], index: 0, kind: input, shape index: {}]
  %s1 = inlined_call_operand.hbm [shape: f32[3,512], index: 1, kind: input, shape index: {}]
  %s2 = inlined_call_operand.hbm [shape: f32[3,512], index: 2, kind: output, shape index: {}]
  %s3 = sld [smem:[#allocation0]]
  $region26: #{tpu_custom_call.1} parent=0
    _
  %s5 = ssub.s32 1, %s3
  %s6 = scalar_select 0, %s5, %s3
  $region1: #{tpu_custom_call.1} parent=0
    #allocation2 [shape = 'u8[512]{0}', space=smem, size = 0x200, scoped, tag = 'input window, operand 0, single buffered']
    #allocation3 [shape = 's32[1]{0}', space=sflag, size = 0x4, scoped, tag = 'scoped memory for tpu_custom_call.1']
    #allocation4 [shape = 's32[1]{0}', space=sflag, size = 0x4, scoped, tag = 'scoped memory for tpu_custom_call.1']
    #allocation5 [shape = 's32[1]{0}', space=sflag, size = 0x4, scoped, tag = 'scoped memory for tpu_custom_call.1']
    #allocation6 [shape = 'u8[8192]{0}', space=vmem, size = 0x2000, scoped, tag = 'input window, operand 1, single buffered']
    #allocation7 [shape = 'u8[8192]{0}', space=vmem, size = 0x2000, scoped, tag = 'output window, operand 0, single buffered']
    %7 = vsyncpa [#allocation5], 0
    %8 = vsyncpa [#allocation3], 0
    %9 = vsyncpa [#allocation4], 0
    // Predicated region
    $region2: #{tpu_custom_call.1} parent=1 // pred_check
      _
    $region3: #{tpu_custom_call.1} parent=1 // pred_check_branch
      %11 = sbr.rel (0) target = $region5
    $region4: #{tpu_custom_call.1} parent=1 // pred_region
      %s13 = ssub.s32 16, 16
      %14 = vsyncadd [#allocation5], %s13
      %17 = dma.hbm_to_smem %s0, 16, [#allocation2], [#allocation5]
    $region5: #{tpu_custom_call.1} parent=1 // pred_fallthru
      _
    // Predicated region
    $region6: #{tpu_custom_call.1} parent=1 // pred_check
      _
    $region7: #{tpu_custom_call.1} parent=1 // pred_check_branch
      %19 = sbr.rel (0) target = $region9
    $region8: #{tpu_custom_call.1} parent=1 // pred_region
      %s21 = ssub.s32 256, 256
      %22 = vsyncadd [#allocation3], %s21
      %s24 = sshll.u32 [#allocation6], 4
      %s25 = int_to_ptr.vmem [resolvable:$true] %s24
      %27 = dma.hbm_to_vmem [thread:$0]  %s1, 256, %s25, [#allocation3]
    $region9: #{tpu_custom_call.1} parent=1 // pred_fallthru
      _
    // Predicated region
    $region10: #{tpu_custom_call.1} parent=1 // pred_check
      _
    $region11: #{tpu_custom_call.1} parent=1 // pred_check_branch
      %29 = sbr.rel (0) target = $region13
    $region12: #{tpu_custom_call.1} parent=1 // pred_region
      %30 = dma.done [#allocation5], 16
    $region13: #{tpu_custom_call.1} parent=1 // pred_fallthru
      _
    // Predicated region
    $region14: #{tpu_custom_call.1} parent=1 // pred_check
      _
    $region15: #{tpu_custom_call.1} parent=1 // pred_check_branch
      %32 = sbr.rel (0) target = $region17
    $region16: #{tpu_custom_call.1} parent=1 // pred_region
      %33 = dma.done [#allocation3], 256
    $region17: #{tpu_custom_call.1} parent=1 // pred_fallthru
      _
    %34 = sfence
    %v35 = vld [vmem:[#allocation6] ss:$4 sm:$0xf]
    %s36 = scalar_lea.vmem [#allocation6], 1
    %v37 = vld [vmem:[%s36] ss:$4 sm:$0xf]
    %s38 = scalar_lea.vmem [#allocation6], 2
    %v39 = vld [vmem:[%s38] ss:$4 sm:$0xf]
    %s40 = sld [smem:[#allocation2]]
    %v41 = vstv %s40
    %v42 = vmul.f32 %v41, %v35
    %s43 = sld [smem:[#allocation2 + $0x1]]
    %v44 = vstv %s43
    %v45 = vmul.f32 %v44, %v37
    %v46 = vadd.f32 %v42, %v45
    %s47 = sld [smem:[#allocation2 + $0x2]]
    %v48 = vstv %s47
    %v49 = vmul.f32 %v48, %v39
    %v50 = vadd.f32 %v46, %v49
    %s51 = sld [smem:[#allocation2 + $0x3]]
    %v52 = vstv %s51
    %v53 = vadd.f32 %v50, %v52
    %s54 = sld [smem:[#allocation2 + $0x4]]
    %v55 = vstv %s54
    %v56 = vmul.f32 %v55, %v35
    %s57 = sld [smem:[#allocation2 + $0x5]]
    %v58 = vstv %s57
    %v59 = vmul.f32 %v58, %v37
    %v60 = vadd.f32 %v56, %v59
    %s61 = sld [smem:[#allocation2 + $0x6]]
    %v62 = vstv %s61
    %v63 = vmul.f32 %v62, %v39
    %v64 = vadd.f32 %v60, %v63
    %s65 = sld [smem:[#allocation2 + $0x7]]
    %v66 = vstv %s65
    %v67 = vadd.f32 %v64, %v66
    %s68 = sld [smem:[#allocation2 + $0x8]]
    %v69 = vstv %s68
    %v70 = vmul.f32 %v69, %v35
    %s71 = sld [smem:[#allocation2 + $0x9]]
    %v72 = vstv %s71
    %v73 = vmul.f32 %v72, %v37
    %v74 = vadd.f32 %v70, %v73
    %s75 = sld [smem:[#allocation2 + $0xa]]
    %v76 = vstv %s75
    %v77 = vmul.f32 %v76, %v39
    %v78 = vadd.f32 %v74, %v77
    %s79 = sld [smem:[#allocation2 + $0xb]]
    %v80 = vstv %s79
    %v81 = vadd.f32 %v78, %v80
    %s82 = sld [smem:[#allocation2 + $0xc]]
    %v83 = vstv %s82
    %v84 = vmul.f32 %v83, %v35
    %s85 = sld [smem:[#allocation2 + $0xd]]
    %v86 = vstv %s85
    %v87 = vmul.f32 %v86, %v37
    %v88 = vadd.f32 %v84, %v87
    %s89 = sld [smem:[#allocation2 + $0xe]]
    %v90 = vstv %s89
    %v91 = vmul.f32 %v90, %v39
    %v92 = vadd.f32 %v88, %v91
    %s93 = sld [smem:[#allocation2 + $0xf]]
    %v94 = vstv %s93
    %v95 = vadd.f32 %v92, %v94
    %v96 = vrcp.pop %v95
    %v97 = vmul.f32 1.0, %v96
    %v98 = vmul.f32 %v53, %v97
    %v99 = vmul.f32 %v67, %v97
    %v100 = vmul.f32 %v81, %v97
    %v101 = vsub.f32 1.0, %v99
    %v102 = vmul.f32 %v101, 15.5
    %v103 = vlaneseq
    %vm104 = vcmp.ge.s32.totalorder %v103, 0
    %vm105 = vcmp.lt.s32.totalorder %v103, 512
    %vm106 = vmand %vm104, %vm105
    %107 = vst.msk [vmem:[#allocation7] ss:$4 sm:$0xf] %vm106, %v102
    %v108 = vadd.f32 %v98, 1.0
    %v109 = vmul.f32 %v108, 15.5
    %s110 = scalar_lea.vmem [#allocation7], 1
    %111 = vst.msk [vmem:[%s110] ss:$4 sm:$0xf] %vm106, %v109
    %s112 = scalar_lea.vmem [#allocation7], 2
    %113 = vst.msk [vmem:[%s112] ss:$4 sm:$0xf] %vm106, %v100
    // Predicated region
    $region18: #{tpu_custom_call.1} parent=1 // pred_check
      _
    $region19: #{tpu_custom_call.1} parent=1 // pred_check_branch
      %115 = sbr.rel (0) target = $region21
    $region20: #{tpu_custom_call.1} parent=1 // pred_region
      %s117 = ssub.s32 256, 256
      %118 = vsyncadd [#allocation4], %s117
      %s120 = sshll.u32 [#allocation7], 4
      %s121 = int_to_ptr.vmem [resolvable:$true] %s120
      %123 = dma.vmem_to_hbm [thread:$0]  %s121, 256, %s2, [#allocation4]
    $region21: #{tpu_custom_call.1} parent=1 // pred_fallthru
      _
    // Predicated region
    $region22: #{tpu_custom_call.1} parent=1 // pred_check
      _
    $region23: #{tpu_custom_call.1} parent=1 // pred_check_branch
      %125 = sbr.rel (0) target = $region25
    $region24: #{tpu_custom_call.1} parent=1 // pred_region
      %126 = dma.done [#allocation4], 256
    $region25: #{tpu_custom_call.1} parent=1 // pred_fallthru
      _
    %127 = vsyncpa [#allocation3], 1
    %128 = vsyncpa [#allocation4], 1
    %129 = vsyncpa [#allocation5], 1

</llo_original>
